<compile_context>
chip_gen: v6e
topology: v6e:2x2x1
jax: 0.10.0
libtpu: 0.0.40
codegen_flags: <defaults>
</compile_context>

<pallas_src>
import jax
import jax.numpy as jnp
from jax.experimental import pallas as pl
from jax.experimental.pallas import tpu as pltpu


def _round_up(x: int, m: int) -> int:
    return ((x + m - 1) // m) * m


def _pool_kernel(seq_ref, keep_ref, out_ref):
    """Masked pooling over the token (S) axis, streamed S-tile by S-tile.

    seq_ref  : [bt, ts, th]  token embeddings (native dtype, upcast in-kernel);
               trailing blocks may contain garbage in OOB rows/tokens/lanes.
    keep_ref : [bt, ts]      f32, 1.0 = include token, 0.0 = drop (zero-padded
               in the wrapper, so OOB token positions are always masked).
    out_ref  : [3, bt, th]   f32, rows: 0 = running sum (scaled to the mean in
               the wrapper), 1 = running max, 2 = cls token.
    """
    s_idx = pl.program_id(2)

    # Upcast right after load: bf16 inputs are DMA'd at half the HBM bytes,
    # arithmetic stays in f32 (v5e has no bf16 VALU path).
    x = seq_ref[...].astype(jnp.float32)          # [bt, ts, th]
    keep = keep_ref[...][:, :, None] > 0.0        # [bt, ts, 1] bool

    # Select-masked partial sum + partial max in one fused pass over the tile.
    # jnp.where (not x * keep) so garbage/NaN in padded or OOB positions can
    # never leak into the accumulators (0 * NaN == NaN hazard).
    part_sum = jnp.sum(jnp.where(keep, x, 0.0), axis=1)          # [bt, th]
    part_max = jnp.max(jnp.where(keep, x, -jnp.inf), axis=1)     # [bt, th]

    @pl.when(s_idx == 0)
    def _init():
        out_ref[0] = part_sum
        out_ref[1] = part_max
        # cls_token = sequence_output[:, 0, :]; token 0 lives in S-block 0.
        # NOTE: the first token is deliberately used here even when
        # ignore_first_token removes it from the pooling mask — this matches
        # the original PyTorch/_pool_tokens semantics on purpose.
        out_ref[2] = x[:, 0, :]

    @pl.when(s_idx > 0)
    def _accumulate():
        out_ref[0] = out_ref[0] + part_sum
        out_ref[1] = jnp.maximum(out_ref[1], part_max)


def _choose_tiles(B, S, H, itemsize, block_b, block_s, block_h, vmem_limit):
    """Pick (bt, ts, th) so the double-buffered working set fits ~3/4 of the
    VMEM limit while keeping per-step tiles as large as possible."""
    bt = B if B <= block_b else block_b          # block_b is a multiple of 8
    th = H if H <= block_h else block_h          # block_h is a multiple of 128
    budget = (vmem_limit * 3) // 4

    def vmem_use(ts):
        seq_blk = bt * ts * th * itemsize
        keep_blk = bt * ts * 4
        out_blk = 3 * bt * th * 4
        return 2 * (seq_blk + keep_blk + out_blk)

    ts = block_s                                  # multiple of 128
    while ts > 128 and vmem_use(ts) > budget:
        ts //= 2
    if S <= ts:
        ts = S                                    # full-S block (no S grid)
    return bt, ts, th


def pool_tokens(sequence_output, padding_mask, ignore_first_token=True,
                block_b=16, block_s=512, block_h=1024,
                vmem_limit_bytes=48 * 1024 * 1024):
    """JAX/Pallas equivalent of ILanguageModel._pool_tokens (+ cls_token).

    sequence_output : [B, S, H] (f32 or bf16)   -- NOT copied / padded.
    padding_mask    : [B, S]    (1 = real token, 0 = padding)
    Returns (reduce_mean, reduce_max, cls_token), each [B, H] float32.
    """
    B, S, H = sequence_output.shape
    itemsize = sequence_output.dtype.itemsize

    # Token-keep mask (mirrors ignore_mask_2d in the PyTorch code).
    keep = padding_mask != 0
    if ignore_first_token:
        keep = keep.at[:, 0].set(False)
    keep_f = keep.astype(jnp.float32)                        # [B, S]

    # Per-row inverse token count, applied in the wrapper after the kernel.
    # Clamp to >= 1: a row with zero kept tokens yields mean == 0 instead of
    # NaN (np.ma would return a fully-masked value there); its max is -inf.
    count = jnp.sum(keep_f, axis=1, keepdims=True)           # [B, 1]
    inv_count = 1.0 / jnp.maximum(count, 1.0)                 # [B, 1]

    bt, ts, th = _choose_tiles(B, S, H, itemsize,
                               block_b, block_s, block_h, vmem_limit_bytes)

    grid = (pl.cdiv(B, bt), pl.cdiv(H, th), pl.cdiv(S, ts))
    Bp = grid[0] * bt
    Sp = grid[2] * ts

    # Only the tiny 2-D mask is padded (zeros), so every OOB token / row of
    # the (unpadded) activations is masked inside the kernel.
    keep_p = jnp.pad(keep_f, ((0, Bp - B), (0, Sp - S)))      # [Bp, Sp]

    bytes_accessed = (B * S * H * itemsize          # activations (read once)
                      + Bp * Sp * 4                 # keep mask
                      + 3 * B * H * 4)              # pooled outputs
    flops = 4 * B * S * H                           # cmp+sel+add / cmp+sel+max

    fn = pl.pallas_call(
        _pool_kernel,
        out_shape=jax.ShapeDtypeStruct((3, B, H), jnp.float32),
        grid_spec=pltpu.PrefetchScalarGridSpec(
            num_scalar_prefetch=0,
            grid=grid,
            in_specs=[
                pl.BlockSpec((bt, ts, th), lambda b, h, s: (b, s, h)),
                pl.BlockSpec((bt, ts), lambda b, h, s: (b, s)),
            ],
            out_specs=pl.BlockSpec((3, bt, th), lambda b, h, s: (0, b, h)),
        ),
        compiler_params=pltpu.CompilerParams(
            dimension_semantics=("parallel", "parallel", "arbitrary"),
            vmem_limit_bytes=vmem_limit_bytes,
        ),
        cost_estimate=pl.CostEstimate(
            flops=flops,
            transcendentals=0,
            bytes_accessed=bytes_accessed,
        ),
    )
    out = fn(sequence_output, keep_p)               # [3, B, H] f32
    mean = out[0] * inv_count                       # reduce_mean
    mx = out[1]                                     # reduce_max
    cls = out[2]                                    # cls_token
    return mean, mx, cls


def _reference(sequence_output, padding_mask, ignore_first_token=True):
    """Plain-JAX reference mirroring the numpy.ma code in _pool_tokens."""
    x = sequence_output.astype(jnp.float32)
    keep = padding_mask != 0
    if ignore_first_token:
        keep = keep.at[:, 0].set(False)
    keep_f = keep.astype(jnp.float32)[:, :, None]
    mean = jnp.sum(x * keep_f, axis=1) / jnp.sum(keep_f, axis=1)
    mx = jnp.max(jnp.where(keep_f > 0, x, -jnp.inf), axis=1)
    cls = x[:, 0, :]
    return mean, mx, cls


if __name__ == "__main__":
    key = jax.random.PRNGKey(0)
    B, S, H = 2, 8, 32

    k1, _ = jax.random.split(key)
    sequence_output = jax.random.normal(k1, (B, S, H), dtype=jnp.float32)
    # padding_mask: 1 = real token, 0 = padding. Make the last tokens padding.
    padding_mask = jnp.array(
        [[1, 1, 1, 1, 1, 1, 0, 0],
         [1, 1, 1, 1, 0, 0, 0, 0]],
        dtype=jnp.int32,
    )

    mean_p, max_p, cls_p = pool_tokens(sequence_output, padding_mask,
                                       ignore_first_token=True)
    jax.block_until_ready((mean_p, max_p, cls_p))

    mean_r, max_r, cls_r = _reference(sequence_output, padding_mask,
                                      ignore_first_token=True)

    assert jnp.allclose(mean_p, mean_r, atol=1e-5, rtol=1e-5)
    assert jnp.allclose(max_p, max_r, atol=1e-5, rtol=1e-5)
    assert jnp.allclose(cls_p, cls_r, atol=1e-5, rtol=1e-5)

    print("KERNEL_OK")
</pallas_src>

<mosaic_0001>
module attributes {stable_mosaic.version = 11 : i64} {
  func.func @_pool_kernel(%arg0: i32, %arg1: i32, %arg2: i32, %arg3: memref<2x8x32xf32, #tpu.memory_space<vmem>>, %arg4: memref<2x8xf32, #tpu.memory_space<vmem>>, %arg5: memref<3x2x32xf32, #tpu.memory_space<vmem>>) attributes {dimension_semantics = [#tpu.dimension_semantics<parallel>, #tpu.dimension_semantics<parallel>, #tpu.dimension_semantics<arbitrary>], iteration_bounds = array<i64: 1, 1, 1>, scalar_prefetch = 0 : i64, scratch_operands = 0 : i64, tpu.core_type = #tpu.core_type<tc>, window_params = [{transform_indices = @transform_0, window_bounds = array<i64: 2, 8, 32>}, {transform_indices = @transform_1, window_bounds = array<i64: 2, 8>}, {transform_indices = @transform_2, window_bounds = array<i64: 3, 2, 32>}]} {
    %c0 = arith.constant 0 : index
    %c0_0 = arith.constant 0 : index
    %c0_1 = arith.constant 0 : index
    %0 = vector.load %arg3[%c0, %c0_0, %c0_1] : memref<2x8x32xf32, #tpu.memory_space<vmem>>, vector<2x8x32xf32>
    %c0_2 = arith.constant 0 : index
    %c0_3 = arith.constant 0 : index
    %1 = vector.load %arg4[%c0_2, %c0_3] : memref<2x8xf32, #tpu.memory_space<vmem>>, vector<2x8xf32>
    %2 = vector.shape_cast %1 : vector<2x8xf32> to vector<2x8x1xf32>
    %cst = arith.constant 0.000000e+00 : f32
    %3 = vector.broadcast %cst : f32 to vector<2x8x1xf32>
    %4 = arith.cmpf ogt, %2, %3 : vector<2x8x1xf32>
    %cst_4 = arith.constant 0.000000e+00 : f32
    %5 = vector.shape_cast %4 : vector<2x8x1xi1> to vector<2x8x1xi1>
    %6 = vector.broadcast %5 : vector<2x8x1xi1> to vector<2x8x32xi1>
    %7 = vector.broadcast %cst_4 : f32 to vector<2x8x32xf32>
    %8 = arith.select %6, %0, %7 : vector<2x8x32xi1>, vector<2x8x32xf32>
    %cst_5 = arith.constant dense<0.000000e+00> : vector<2x32xf32>
    %9 = vector.multi_reduction <add>, %8, %cst_5 [1] : vector<2x8x32xf32> to vector<2x32xf32>
    %cst_6 = arith.constant 0xFF800000 : f32
    %10 = vector.shape_cast %4 : vector<2x8x1xi1> to vector<2x8x1xi1>
    %11 = vector.broadcast %10 : vector<2x8x1xi1> to vector<2x8x32xi1>
    %12 = vector.broadcast %cst_6 : f32 to vector<2x8x32xf32>
    %13 = arith.select %11, %0, %12 : vector<2x8x32xi1>, vector<2x8x32xf32>
    %cst_7 = arith.constant dense<0xFF800000> : vector<2x32xf32>
    %14 = vector.multi_reduction <maximumf>, %13, %cst_7 [1] : vector<2x8x32xf32> to vector<2x32xf32>
    %c0_i32 = arith.constant 0 : i32
    %15 = arith.cmpi eq, %arg2, %c0_i32 : i32
    %16 = arith.extui %15 : i1 to i32
    %c0_i32_8 = arith.constant 0 : i32
    %17 = arith.cmpi ne, %16, %c0_i32_8 : i32
    scf.if %17 {
      %c0_11 = arith.constant 0 : index
      %c0_12 = arith.constant 0 : index
      %c0_13 = arith.constant 0 : index
      %21 = vector.load %arg5[%c0_11, %c0_12, %c0_13] : memref<3x2x32xf32, #tpu.memory_space<vmem>>, vector<1x2x32xf32>
      %22 = vector.shape_cast %21 : vector<1x2x32xf32> to vector<2x32xf32>
      %23 = vector.shape_cast %9 : vector<2x32xf32> to vector<1x2x32xf32>
      tpu.vector_store %arg5[%c0_11, %c0_12, %c0_13], %23 {strides = array<i32>} : memref<3x2x32xf32, #tpu.memory_space<vmem>>, vector<1x2x32xf32>,
      %c1 = arith.constant 1 : index
      %c0_14 = arith.constant 0 : index
      %c0_15 = arith.constant 0 : index
      %24 = vector.load %arg5[%c1, %c0_14, %c0_15] : memref<3x2x32xf32, #tpu.memory_space<vmem>>, vector<1x2x32xf32>
      %25 = vector.shape_cast %24 : vector<1x2x32xf32> to vector<2x32xf32>
      %26 = vector.shape_cast %14 : vector<2x32xf32> to vector<1x2x32xf32>
      tpu.vector_store %arg5[%c1, %c0_14, %c0_15], %26 {strides = array<i32>} : memref<3x2x32xf32, #tpu.memory_space<vmem>>, vector<1x2x32xf32>,
      %27 = vector.extract_strided_slice %0 {offsets = [0, 0, 0], sizes = [2, 1, 32], strides = [1, 1, 1]} : vector<2x8x32xf32> to vector<2x1x32xf32>
      %28 = vector.shape_cast %27 : vector<2x1x32xf32> to vector<2x32xf32>
      %c2 = arith.constant 2 : index
      %c0_16 = arith.constant 0 : index
      %c0_17 = arith.constant 0 : index
      %29 = vector.load %arg5[%c2, %c0_16, %c0_17] : memref<3x2x32xf32, #tpu.memory_space<vmem>>, vector<1x2x32xf32>
      %30 = vector.shape_cast %29 : vector<1x2x32xf32> to vector<2x32xf32>
      %31 = vector.shape_cast %28 : vector<2x32xf32> to vector<1x2x32xf32>
      tpu.vector_store %arg5[%c2, %c0_16, %c0_17], %31 {strides = array<i32>} : memref<3x2x32xf32, #tpu.memory_space<vmem>>, vector<1x2x32xf32>,
    } else {
    }
    %c0_i32_9 = arith.constant 0 : i32
    %18 = arith.cmpi sgt, %arg2, %c0_i32_9 : i32
    %19 = arith.extui %18 : i1 to i32
    %c0_i32_10 = arith.constant 0 : i32
    %20 = arith.cmpi ne, %19, %c0_i32_10 : i32
    scf.if %20 {
      %c0_11 = arith.constant 0 : index
      %c0_12 = arith.constant 0 : index
      %c0_13 = arith.constant 0 : index
      %21 = vector.load %arg5[%c0_11, %c0_12, %c0_13] : memref<3x2x32xf32, #tpu.memory_space<vmem>>, vector<1x2x32xf32>
      %22 = vector.shape_cast %21 : vector<1x2x32xf32> to vector<2x32xf32>
      %23 = arith.addf %22, %9 : vector<2x32xf32>
      %c0_14 = arith.constant 0 : index
      %c0_15 = arith.constant 0 : index
      %c0_16 = arith.constant 0 : index
      %24 = vector.load %arg5[%c0_14, %c0_15, %c0_16] : memref<3x2x32xf32, #tpu.memory_space<vmem>>, vector<1x2x32xf32>
      %25 = vector.shape_cast %24 : vector<1x2x32xf32> to vector<2x32xf32>
      %26 = vector.shape_cast %23 : vector<2x32xf32> to vector<1x2x32xf32>
      tpu.vector_store %arg5[%c0_14, %c0_15, %c0_16], %26 {strides = array<i32>} : memref<3x2x32xf32, #tpu.memory_space<vmem>>, vector<1x2x32xf32>,
      %c1 = arith.constant 1 : index
      %c0_17 = arith.constant 0 : index
      %c0_18 = arith.constant 0 : index
      %27 = vector.load %arg5[%c1, %c0_17, %c0_18] : memref<3x2x32xf32, #tpu.memory_space<vmem>>, vector<1x2x32xf32>
      %28 = vector.shape_cast %27 : vector<1x2x32xf32> to vector<2x32xf32>
      %29 = arith.maximumf %28, %14 : vector<2x32xf32>
      %c1_19 = arith.constant 1 : index
      %c0_20 = arith.constant 0 : index
      %c0_21 = arith.constant 0 : index
      %30 = vector.load %arg5[%c1_19, %c0_20, %c0_21] : memref<3x2x32xf32, #tpu.memory_space<vmem>>, vector<1x2x32xf32>
      %31 = vector.shape_cast %30 : vector<1x2x32xf32> to vector<2x32xf32>
      %32 = vector.shape_cast %29 : vector<2x32xf32> to vector<1x2x32xf32>
      tpu.vector_store %arg5[%c1_19, %c0_20, %c0_21], %32 {strides = array<i32>} : memref<3x2x32xf32, #tpu.memory_space<vmem>>, vector<1x2x32xf32>,
    } else {
    }
    return
  }
  func.func @transform_0(%arg0: i32, %arg1: i32, %arg2: i32) -> (i32, i32, i32) {
    %c0_i32 = arith.constant 0 : i32
    return %arg0, %arg2, %arg1 : i32, i32, i32
  }
  func.func @transform_1(%arg0: i32, %arg1: i32, %arg2: i32) -> (i32, i32) {
    %c0_i32 = arith.constant 0 : i32
    return %arg0, %arg2 : i32, i32
  }
  func.func @transform_2(%arg0: i32, %arg1: i32, %arg2: i32) -> (i32, i32, i32) {
    %c0_i32 = arith.constant 0 : i32
    %c0_i32_0 = arith.constant 0 : i32
    return %c0_i32, %arg0, %arg1 : i32, i32, i32
  }
}

</mosaic_0001>

<llo_original>
// kernel: tpu_custom_call.1
$region0: #{tpu_custom_call.1}
  #allocation0 [shape = 'u32[]', space=smem, size = 0x4, offset = 0x4, fixed_abs, tag = 'smem constant byte address 0x4 - core index']
  #allocation1 [shape = 'u32[144,128]{1,0:T(1,128)}', space=vmem, size = 0x12000, scoped, tag = 'internal scratch']
  %s0 = inlined_call_operand.hbm [shape: f32[2,8,32], index: 0, kind: input, shape index: {}]
  %s1 = inlined_call_operand.hbm [shape: f32[2,8], index: 1, kind: input, shape index: {}]
  %s2 = inlined_call_operand.hbm [shape: f32[3,2,32], index: 2, kind: output, shape index: {}]
  %s3 = sld [smem:[#allocation0]]
  $region34: #{tpu_custom_call.1} parent=0
    _
  %s5 = ssub.s32 1, %s3
  %s6 = scalar_select 0, %s5, %s3
  $region1: #{tpu_custom_call.1} parent=0
    #allocation2 [shape = 'u8[8192]{0}', space=vmem, size = 0x2000, scoped, tag = 'input window, operand 0, single buffered']
    #allocation3 [shape = 's32[1]{0}', space=sflag, size = 0x4, scoped, tag = 'scoped memory for tpu_custom_call.1']
    #allocation4 [shape = 's32[1]{0}', space=sflag, size = 0x4, scoped, tag = 'scoped memory for tpu_custom_call.1']
    #allocation5 [shape = 'u8[1024]{0}', space=vmem, size = 0x400, scoped, tag = 'input window, operand 1, single buffered']
    #allocation6 [shape = 's32[1]{0}', space=sflag, size = 0x4, scoped, tag = 'scoped memory for tpu_custom_call.1']
    #allocation7 [shape = 'u8[3072]{0}', space=vmem, size = 0xc00, scoped, tag = 'output window, operand 0, single buffered']
    %7 = vsyncpa [#allocation3], 0
    %8 = vsyncpa [#allocation6], 0
    %9 = vsyncpa [#allocation4], 0
    // Predicated region
    $region2: #{tpu_custom_call.1} parent=1 // pred_check
      _
    $region3: #{tpu_custom_call.1} parent=1 // pred_check_branch
      %11 = sbr.rel (0) target = $region5
    $region4: #{tpu_custom_call.1} parent=1 // pred_region
      %s13 = ssub.s32 256, 256
      %14 = vsyncadd [#allocation3], %s13
      %s15 = sshll.u32 [#allocation2], 4
      %s16 = int_to_ptr.vmem [resolvable:$true] %s15
      %21 = dma.hbm_to_vmem [thread:$0]  %s0, 256, %s16, [#allocation3], 128, 128, 8
    $region5: #{tpu_custom_call.1} parent=1 // pred_fallthru
      _
    // Predicated region
    $region6: #{tpu_custom_call.1} parent=1 // pred_check
      _
    $region7: #{tpu_custom_call.1} parent=1 // pred_check_branch
      %23 = sbr.rel (0) target = $region9
    $region8: #{tpu_custom_call.1} parent=1 // pred_region
      %s25 = ssub.s32 32, 32
      %26 = vsyncadd [#allocation6], %s25
      %s28 = sshll.u32 [#allocation5], 4
      %s29 = int_to_ptr.vmem [resolvable:$true] %s28
      %31 = dma.hbm_to_vmem [thread:$0]  %s1, 32, %s29, [#allocation6]
    $region9: #{tpu_custom_call.1} parent=1 // pred_fallthru
      _
    // Predicated region
    $region10: #{tpu_custom_call.1} parent=1 // pred_check
      _
    $region11: #{tpu_custom_call.1} parent=1 // pred_check_branch
      %33 = sbr.rel (0) target = $region13
    $region12: #{tpu_custom_call.1} parent=1 // pred_region
      %34 = dma.done [#allocation3], 256
    $region13: #{tpu_custom_call.1} parent=1 // pred_fallthru
      _
    // Predicated region
    $region14: #{tpu_custom_call.1} parent=1 // pred_check
      _
    $region15: #{tpu_custom_call.1} parent=1 // pred_check_branch
      %36 = sbr.rel (0) target = $region17
    $region16: #{tpu_custom_call.1} parent=1 // pred_region
      %37 = dma.done [#allocation6], 32
    $region17: #{tpu_custom_call.1} parent=1 // pred_fallthru
      _
    %v38 = vld [vmem:[#allocation2] sm:$0xff]
    %v39 = vld [vmem:[#allocation2 + $0x8] sm:$0xff]
    %v40 = vld [vmem:[#allocation5] sm:$0x3]
    %v41 = vlaneseq
    %v42 = vshrl.u32 %v41, 7
    %v43 = vsub.s32 0, %v42
    %v44 = vrot.slane %v40, %v43
    %46 = vbcast.lane.b32.xlu0 %v44, 256
    %v47 = vpop.permute.xlu0 %46
    %v48 = vlaneseq
    %v49 = vshrl.u32 %v48, 7
    %v50 = vsub.s32 1, %v49
    %v51 = vrot.slane %v40, %v50
    %53 = vbcast.lane.b32.xlu0 %v51, 256
    %v54 = vpop.permute.xlu0 %53
    %vm55 = vcmp.gt.f32.partialorder %v47, 0.0
    %vm56 = vcmp.gt.f32.partialorder %v54, 0.0
    %v57 = vsel %vm55, 1, 0
    %v58 = vsel %vm56, 1, 0
    %vm59 = vcmp.eq.s32.totalorder %v57, 1
    %vm60 = vcmp.eq.s32.totalorder %v58, 1
    %v61 = vsel %vm59, %v38, 0.0
    %v62 = vsel %vm60, %v39, 0.0
    %vm63 = vcmask 261120
    %v64 = vsel %vm63, %v61, 0.0
    %v65 = vrot.slane %v64, 4
    %v66 = vadd.f32 %v64, %v65
    %v67 = vrot.slane %v66, 2
    %v68 = vadd.f32 %v66, %v67
    %v69 = vrot.slane %v68, 1
    %v70 = vadd.f32 %v68, %v69
    %v71 = vsel %vm63, %v62, 0.0
    %v72 = vrot.slane %v71, 4
    %v73 = vadd.f32 %v71, %v72
    %v74 = vrot.slane %v73, 2
    %v75 = vadd.f32 %v73, %v74
    %v76 = vrot.slane %v75, 1
    %v77 = vadd.f32 %v75, %v76
    %v78 = vsel %vm59, %v38, -inf
    %v79 = vsel %vm60, %v39, -inf
    %v80 = vsel %vm63, %v78, -inf
    %v81 = vrot.slane %v80, 4
    %v82 = vmax.f32 %v80, %v81
    %v83 = vrot.slane %v82, 2
    %v84 = vmax.f32 %v82, %v83
    %v85 = vrot.slane %v84, 1
    %v86 = vmax.f32 %v84, %v85
    %v87 = vsel %vm63, %v79, -inf
    %v88 = vrot.slane %v87, 4
    %v89 = vmax.f32 %v87, %v88
    %v90 = vrot.slane %v89, 2
    %v91 = vmax.f32 %v89, %v90
    %v92 = vrot.slane %v91, 1
    %v93 = vmax.f32 %v91, %v92
    %p94 = scmp.eq.s32.totalorder 0, 0
    // Predicated region
    $region18: #{tpu_custom_call.1} parent=1 // pred_check
      %p95 = pneg %p94
    $region19: #{tpu_custom_call.1} parent=1 // pred_check_branch
      %97 = sbr.rel (%p95) target = $region21
    $region20: #{tpu_custom_call.1} parent=1 // pred_region
      %vm100 = vcmask 1041409
      %v101 = vsel %vm100, %v77, %v70
      %vm103 = vcmask 254976
      %104 = vst.msk [vmem:[#allocation7] sm:$0x3] %vm103, %v101
      %v107 = vsel %vm100, %v93, %v86
      %s109 = scalar_lea.vmem [#allocation7], 2
      %110 = vst.msk [vmem:[%s109] sm:$0x3] %vm103, %v107
      %v113 = vrot.slane %v39, 7
      %v114 = vsel %vm100, %v113, %v38
      %s116 = scalar_lea.vmem [#allocation7], 4
      %117 = vst.msk [vmem:[%s116] sm:$0x3] %vm103, %v114
    $region21: #{tpu_custom_call.1} parent=1 // pred_fallthru
      _
    %p118 = scmp.gt.s32.totalorder 0, 0
    // Predicated region
    $region22: #{tpu_custom_call.1} parent=1 // pred_check
      %p119 = pneg %p118
    $region23: #{tpu_custom_call.1} parent=1 // pred_check_branch
      %121 = sbr.rel (%p119) target = $region25
    $region24: #{tpu_custom_call.1} parent=1 // pred_region
      %v122 = vld [vmem:[#allocation7] sm:$0x3]
      %vm125 = vcmask 1041409
      %v126 = vsel %vm125, %v77, %v70
      %v128 = vadd.f32 %v122, %v126
      %vm129 = vcmask 254976
      %130 = vst.msk [vmem:[#allocation7] sm:$0x3] %vm129, %v128
      %s131 = scalar_lea.vmem [#allocation7], 2
      %v132 = vld [vmem:[%s131] sm:$0x3]
      %v135 = vsel %vm125, %v93, %v86
      %v137 = vmax.f32 %v132, %v135
      %138 = vst.msk [vmem:[%s131] sm:$0x3] %vm129, %v137
    $region25: #{tpu_custom_call.1} parent=1 // pred_fallthru
      _
    // Predicated region
    $region26: #{tpu_custom_call.1} parent=1 // pred_check
      _
    $region27: #{tpu_custom_call.1} parent=1 // pred_check_branch
      %140 = sbr.rel (0) target = $region29
    $region28: #{tpu_custom_call.1} parent=1 // pred_region
      %s142 = ssub.s32 96, 96
      %143 = vsyncadd [#allocation4], %s142
      %s144 = sshll.u32 [#allocation7], 4
      %s145 = int_to_ptr.vmem [resolvable:$true] %s144
      %150 = dma.vmem_to_hbm [thread:$0]  %s145, 96, %s2, [#allocation4], 32, 32, 2
    $region29: #{tpu_custom_call.1} parent=1 // pred_fallthru
      _
    // Predicated region
    $region30: #{tpu_custom_call.1} parent=1 // pred_check
      _
    $region31: #{tpu_custom_call.1} parent=1 // pred_check_branch
      %152 = sbr.rel (0) target = $region33
    $region32: #{tpu_custom_call.1} parent=1 // pred_region
      %153 = dma.done [#allocation4], 96
    $region33: #{tpu_custom_call.1} parent=1 // pred_fallthru
      _
    %154 = vsyncpa [#allocation3], 1
    %155 = vsyncpa [#allocation6], 1
    %156 = vsyncpa [#allocation4], 1

</llo_original>
